<compile_context>
chip_gen: v7x
topology: tpu7x:2x2x1
jax: 0.10.0
libtpu: 0.0.40
codegen_flags: <defaults>
</compile_context>

<pallas_src>
import jax
import jax.numpy as jnp
from jax.experimental import pallas as pl
from jax.experimental.pallas import tpu as pltpu

_LANE = 128


def _round_up(n, m):
    return ((n + m - 1) // m) * m


def categorical_mlp_kernel(x_ref, g_ref, w1_ref, b1_ref, w2_ref, b2_ref,
                           w3_ref, b3_ref, sample_ref, logp_ref):
    # ----- MLP forward: Linear -> ReLU -> Linear -> ReLU -> Linear (identity) -----
    # Activations are (features, TILE_B): batch on the lane axis, fully lane-dense.
    x = x_ref[...]                                                       # (D_in, TILE_B)
    h = jnp.dot(w1_ref[...], x, preferred_element_type=jnp.float32) + b1_ref[...]
    h = jnp.maximum(h, 0.0)
    h = jnp.dot(w2_ref[...], h, preferred_element_type=jnp.float32) + b2_ref[...]
    h = jnp.maximum(h, 0.0)
    logits = jnp.dot(w3_ref[...], h, preferred_element_type=jnp.float32) + b3_ref[...]
    C, TB = logits.shape                                                 # classes on sublanes

    # ----- log_softmax over classes (sublane axis), numerically stable -----
    m = jnp.max(logits, axis=0, keepdims=True)
    z = logits - m
    lse = jnp.log(jnp.sum(jnp.exp(z), axis=0, keepdims=True))
    logp_all = z - lse                                                   # (C, TILE_B)

    # ----- Categorical sample via Gumbel-max (per-tile noise streamed in) -----
    perturbed = logp_all + g_ref[...]
    pmax = jnp.max(perturbed, axis=0, keepdims=True)
    row = jax.lax.broadcasted_iota(jnp.int32, (C, TB), 0)
    # first class index attaining the max (ties are measure-zero with continuous noise)
    sample = jnp.min(jnp.where(perturbed == pmax, row, jnp.int32(C)),
                     axis=0, keepdims=True)                              # (1, TILE_B) int32

    # log_prob(sample): one-hot gather from logp_all
    sel = row == sample
    logp = jnp.sum(jnp.where(sel, logp_all, 0.0), axis=0, keepdims=True)  # (1, TILE_B)

    # Lane-dense (1, TILE_B) stores.
    sample_ref[...] = sample
    logp_ref[...] = logp


def categorical_mlp(x, params, key):
    """x: (B, D_in) f32.  params = [(w, b), ...] in PyTorch nn.Linear convention (out,in)/(out,)."""
    B, d_in = x.shape
    (w1, b1), (w2, b2), (w3, b3) = params
    h1, h2, n_classes = w1.shape[0], w2.shape[0], w3.shape[0]

    # Lane-dense batch tile (multiple of 128), capped so double-buffered tiles stay small in VMEM.
    tile_b = min(512, _round_up(B, _LANE))
    b_pad = _round_up(B, tile_b)
    grid = (b_pad // tile_b,)

    # Batch onto the lane axis; zero-pad to the tile boundary (padded columns are sliced off).
    x_t = jnp.pad(x.astype(jnp.float32).T, ((0, 0), (0, b_pad - B)))     # (D_in, B_pad)
    gumbel = jax.random.gumbel(key, (n_classes, b_pad), jnp.float32)     # per-column Gumbel noise

    resident = lambda i: (0, 0)   # weights/biases: same block every step -> stay resident in VMEM
    tiled = lambda i: (0, i)

    sample2d, logp2d = pl.pallas_call(
        categorical_mlp_kernel,
        out_shape=(jax.ShapeDtypeStruct((1, b_pad), jnp.int32),
                   jax.ShapeDtypeStruct((1, b_pad), jnp.float32)),
        grid=grid,
        in_specs=[
            pl.BlockSpec((d_in, tile_b), tiled),        # x tile (double-buffered by Pallas)
            pl.BlockSpec((n_classes, tile_b), tiled),   # Gumbel noise tile
            pl.BlockSpec((h1, d_in), resident),         # w1  (PyTorch (out, in) layout)
            pl.BlockSpec((h1, 1), resident),            # b1
            pl.BlockSpec((h2, h1), resident),           # w2
            pl.BlockSpec((h2, 1), resident),            # b2
            pl.BlockSpec((n_classes, h2), resident),    # w3
            pl.BlockSpec((n_classes, 1), resident),     # b3
        ],
        out_specs=(pl.BlockSpec((1, tile_b), tiled),
                   pl.BlockSpec((1, tile_b), tiled)),
        compiler_params=pltpu.CompilerParams(
            dimension_semantics=("parallel",),          # batch tiles shard across v7x's 2 TCs
            vmem_limit_bytes=32 * 1024 * 1024,          # explicit, well under v7x's 64 MiB VMEM
        ),
    )(x_t, gumbel,
      w1, b1[:, None],
      w2, b2[:, None],
      w3, b3[:, None])

    # TODO(synk): PyTorch Categorical.sample() returns int64; TPU kernel emits int32.
    return sample2d[0, :B], logp2d[0, :B]


def init_linear(key, fan_in, fan_out):
    # Deterministic init mimicking nn.Linear's default U(-1/sqrt(fan_in), 1/sqrt(fan_in)).
    kw, kb = jax.random.split(key)
    bound = 1.0 / jnp.sqrt(fan_in)
    w = jax.random.uniform(kw, (fan_out, fan_in), jnp.float32, -bound, bound)
    b = jax.random.uniform(kb, (fan_out,), jnp.float32, -bound, bound)
    return w, b


if __name__ == "__main__":
    sizes = [16, 32, 32, 8]   # D_in=16, two hidden of 32, 8 categories
    B = 8

    key = jax.random.PRNGKey(0)
    kx, k1, k2, k3, ksample = jax.random.split(key, 5)
    x = jax.random.normal(kx, (B, sizes[0]), jnp.float32)
    params = [init_linear(k1, sizes[0], sizes[1]),
              init_linear(k2, sizes[1], sizes[2]),
              init_linear(k3, sizes[2], sizes[3])]

    sample, log_proba = categorical_mlp(x, params, ksample)
    jax.block_until_ready((sample, log_proba))

    assert sample.shape == (B,) and log_proba.shape == (B,)
    assert sample.dtype == jnp.int32
    assert bool(jnp.all((sample >= 0) & (sample < sizes[-1])))
    assert bool(jnp.all(log_proba <= 1e-6))

    # Cross-check log_prob against a pure-JAX reference of the same forward pass.
    h = jnp.maximum(x @ params[0][0].T + params[0][1], 0.0)
    h = jnp.maximum(h @ params[1][0].T + params[1][1], 0.0)
    ref_logits = h @ params[2][0].T + params[2][1]
    ref_logp = jax.nn.log_softmax(ref_logits, axis=-1)[jnp.arange(B), sample]
    assert bool(jnp.allclose(log_proba, ref_logp, atol=1e-2)), (log_proba, ref_logp)

    print("KERNEL_OK")
</pallas_src>

<mosaic_0001>
module attributes {stable_mosaic.version = 11 : i64} {
  func.func @categorical_mlp_kernel(%arg0: i32, %arg1: memref<16x128xf32, #tpu.memory_space<vmem>>, %arg2: memref<8x128xf32, #tpu.memory_space<vmem>>, %arg3: memref<32x16xf32, #tpu.memory_space<vmem>>, %arg4: memref<32x1xf32, #tpu.memory_space<vmem>>, %arg5: memref<32x32xf32, #tpu.memory_space<vmem>>, %arg6: memref<32x1xf32, #tpu.memory_space<vmem>>, %arg7: memref<8x32xf32, #tpu.memory_space<vmem>>, %arg8: memref<8x1xf32, #tpu.memory_space<vmem>>, %arg9: memref<1x128xi32, #tpu.memory_space<vmem>>, %arg10: memref<1x128xf32, #tpu.memory_space<vmem>>) attributes {dimension_semantics = [#tpu.dimension_semantics<parallel>], iteration_bounds = array<i64: 1>, scalar_prefetch = 0 : i64, scratch_operands = 0 : i64, tpu.core_type = #tpu.core_type<tc>, window_params = [{transform_indices = @transform_0, window_bounds = array<i64: 16, 128>}, {transform_indices = @transform_1, window_bounds = array<i64: 8, 128>}, {pipeline_mode = #tpu.pipeline_mode<synchronous>, transform_indices = @transform_2, window_bounds = array<i64: 32, 16>}, {pipeline_mode = #tpu.pipeline_mode<synchronous>, transform_indices = @transform_3, window_bounds = array<i64: 32, 1>}, {pipeline_mode = #tpu.pipeline_mode<synchronous>, transform_indices = @transform_4, window_bounds = array<i64: 32, 32>}, {pipeline_mode = #tpu.pipeline_mode<synchronous>, transform_indices = @transform_5, window_bounds = array<i64: 32, 1>}, {pipeline_mode = #tpu.pipeline_mode<synchronous>, transform_indices = @transform_6, window_bounds = array<i64: 8, 32>}, {pipeline_mode = #tpu.pipeline_mode<synchronous>, transform_indices = @transform_7, window_bounds = array<i64: 8, 1>}, {transform_indices = @transform_8, window_bounds = array<i64: 1, 128>}, {transform_indices = @transform_9, window_bounds = array<i64: 1, 128>}]} {
    %c0 = arith.constant 0 : index
    %c0_0 = arith.constant 0 : index
    %0 = vector.load %arg1[%c0, %c0_0] : memref<16x128xf32, #tpu.memory_space<vmem>>, vector<16x128xf32>
    %c0_1 = arith.constant 0 : index
    %c0_2 = arith.constant 0 : index
    %1 = vector.load %arg3[%c0_1, %c0_2] : memref<32x16xf32, #tpu.memory_space<vmem>>, vector<32x16xf32>
    %cst = arith.constant dense<0.000000e+00> : vector<32x128xf32>
    %2 = tpu.matmul %1, %0, %cst {dimension_numbers = #tpu.dot_dimension_numbers<[1], [0], [0], [1], [0, 0, 1, 1], [], []>} : vector<32x16xf32>, vector<16x128xf32>, vector<32x128xf32> -> vector<32x128xf32>
    %c0_3 = arith.constant 0 : index
    %c0_4 = arith.constant 0 : index
    %3 = vector.load %arg4[%c0_3, %c0_4] : memref<32x1xf32, #tpu.memory_space<vmem>>, vector<32x1xf32>
    %4 = vector.broadcast %3 : vector<32x1xf32> to vector<32x128xf32>
    %5 = arith.addf %2, %4 : vector<32x128xf32>
    %cst_5 = arith.constant 0.000000e+00 : f32
    %6 = vector.broadcast %cst_5 : f32 to vector<32x128xf32>
    %7 = arith.maximumf %5, %6 : vector<32x128xf32>
    %c0_6 = arith.constant 0 : index
    %c0_7 = arith.constant 0 : index
    %8 = vector.load %arg5[%c0_6, %c0_7] : memref<32x32xf32, #tpu.memory_space<vmem>>, vector<32x32xf32>
    %cst_8 = arith.constant dense<0.000000e+00> : vector<32x128xf32>
    %9 = tpu.matmul %8, %7, %cst_8 {dimension_numbers = #tpu.dot_dimension_numbers<[1], [0], [0], [1], [0, 0, 1, 1], [], []>} : vector<32x32xf32>, vector<32x128xf32>, vector<32x128xf32> -> vector<32x128xf32>
    %c0_9 = arith.constant 0 : index
    %c0_10 = arith.constant 0 : index
    %10 = vector.load %arg6[%c0_9, %c0_10] : memref<32x1xf32, #tpu.memory_space<vmem>>, vector<32x1xf32>
    %11 = vector.broadcast %10 : vector<32x1xf32> to vector<32x128xf32>
    %12 = arith.addf %9, %11 : vector<32x128xf32>
    %cst_11 = arith.constant 0.000000e+00 : f32
    %13 = vector.broadcast %cst_11 : f32 to vector<32x128xf32>
    %14 = arith.maximumf %12, %13 : vector<32x128xf32>
    %c0_12 = arith.constant 0 : index
    %c0_13 = arith.constant 0 : index
    %15 = vector.load %arg7[%c0_12, %c0_13] : memref<8x32xf32, #tpu.memory_space<vmem>>, vector<8x32xf32>
    %cst_14 = arith.constant dense<0.000000e+00> : vector<8x128xf32>
    %16 = tpu.matmul %15, %14, %cst_14 {dimension_numbers = #tpu.dot_dimension_numbers<[1], [0], [0], [1], [0, 0, 1, 1], [], []>} : vector<8x32xf32>, vector<32x128xf32>, vector<8x128xf32> -> vector<8x128xf32>
    %c0_15 = arith.constant 0 : index
    %c0_16 = arith.constant 0 : index
    %17 = vector.load %arg8[%c0_15, %c0_16] : memref<8x1xf32, #tpu.memory_space<vmem>>, vector<8x1xf32>
    %18 = vector.broadcast %17 : vector<8x1xf32> to vector<8x128xf32>
    %19 = arith.addf %16, %18 : vector<8x128xf32>
    %cst_17 = arith.constant dense<0xFF800000> : vector<128xf32>
    %20 = vector.multi_reduction <maximumf>, %19, %cst_17 [0] : vector<8x128xf32> to vector<128xf32>
    %21 = vector.shape_cast %20 : vector<128xf32> to vector<1x128xf32>
    %22 = vector.broadcast %21 : vector<1x128xf32> to vector<8x128xf32>
    %23 = arith.subf %19, %22 : vector<8x128xf32>
    %24 = math.exp %23 : vector<8x128xf32>
    %cst_18 = arith.constant dense<0.000000e+00> : vector<128xf32>
    %25 = vector.multi_reduction <add>, %24, %cst_18 [0] : vector<8x128xf32> to vector<128xf32>
    %26 = vector.shape_cast %25 : vector<128xf32> to vector<1x128xf32>
    %27 = math.log %26 : vector<1x128xf32>
    %28 = vector.broadcast %27 : vector<1x128xf32> to vector<8x128xf32>
    %29 = arith.subf %23, %28 : vector<8x128xf32>
    %c0_19 = arith.constant 0 : index
    %c0_20 = arith.constant 0 : index
    %30 = vector.load %arg2[%c0_19, %c0_20] : memref<8x128xf32, #tpu.memory_space<vmem>>, vector<8x128xf32>
    %31 = arith.addf %29, %30 : vector<8x128xf32>
    %cst_21 = arith.constant dense<0xFF800000> : vector<128xf32>
    %32 = vector.multi_reduction <maximumf>, %31, %cst_21 [0] : vector<8x128xf32> to vector<128xf32>
    %33 = vector.shape_cast %32 : vector<128xf32> to vector<1x128xf32>
    %34 = tpu.iota {dimensions = array<i32: 0>} : vector<8x128xi32>
    %35 = vector.broadcast %33 : vector<1x128xf32> to vector<8x128xf32>
    %36 = arith.cmpf oeq, %31, %35 : vector<8x128xf32>
    %c8_i32 = arith.constant 8 : i32
    %37 = vector.broadcast %c8_i32 : i32 to vector<8x128xi32>
    %38 = arith.select %36, %34, %37 : vector<8x128xi1>, vector<8x128xi32>
    %cst_22 = arith.constant dense<2147483647> : vector<128xi32>
    %39 = vector.multi_reduction <minsi>, %38, %cst_22 [0] : vector<8x128xi32> to vector<128xi32>
    %40 = vector.shape_cast %39 : vector<128xi32> to vector<1x128xi32>
    %41 = vector.broadcast %40 : vector<1x128xi32> to vector<8x128xi32>
    %42 = arith.cmpi eq, %34, %41 : vector<8x128xi32>
    %cst_23 = arith.constant 0.000000e+00 : f32
    %43 = vector.broadcast %cst_23 : f32 to vector<8x128xf32>
    %44 = arith.select %42, %29, %43 : vector<8x128xi1>, vector<8x128xf32>
    %cst_24 = arith.constant dense<0.000000e+00> : vector<128xf32>
    %45 = vector.multi_reduction <add>, %44, %cst_24 [0] : vector<8x128xf32> to vector<128xf32>
    %46 = vector.shape_cast %45 : vector<128xf32> to vector<1x128xf32>
    %c0_25 = arith.constant 0 : index
    %c0_26 = arith.constant 0 : index
    %47 = vector.load %arg9[%c0_25, %c0_26] : memref<1x128xi32, #tpu.memory_space<vmem>>, vector<1x128xi32>
    tpu.vector_store %arg9[%c0_25, %c0_26], %40 {strides = array<i32>} : memref<1x128xi32, #tpu.memory_space<vmem>>, vector<1x128xi32>,
    %c0_27 = arith.constant 0 : index
    %c0_28 = arith.constant 0 : index
    %48 = vector.load %arg10[%c0_27, %c0_28] : memref<1x128xf32, #tpu.memory_space<vmem>>, vector<1x128xf32>
    tpu.vector_store %arg10[%c0_27, %c0_28], %46 {strides = array<i32>} : memref<1x128xf32, #tpu.memory_space<vmem>>, vector<1x128xf32>,
    return
  }
  func.func @transform_0(%arg0: i32) -> (i32, i32) {
    %c0_i32 = arith.constant 0 : i32
    %c0_i32_0 = arith.constant 0 : i32
    return %c0_i32, %arg0 : i32, i32
  }
  func.func @transform_1(%arg0: i32) -> (i32, i32) {
    %c0_i32 = arith.constant 0 : i32
    %c0_i32_0 = arith.constant 0 : i32
    return %c0_i32, %arg0 : i32, i32
  }
  func.func @transform_2(%arg0: i32) -> (i32, i32) {
    %c0_i32 = arith.constant 0 : i32
    %c0_i32_0 = arith.constant 0 : i32
    %c0_i32_1 = arith.constant 0 : i32
    return %c0_i32, %c0_i32_0 : i32, i32
  }
  func.func @transform_3(%arg0: i32) -> (i32, i32) {
    %c0_i32 = arith.constant 0 : i32
    %c0_i32_0 = arith.constant 0 : i32
    %c0_i32_1 = arith.constant 0 : i32
    return %c0_i32, %c0_i32_0 : i32, i32
  }
  func.func @transform_4(%arg0: i32) -> (i32, i32) {
    %c0_i32 = arith.constant 0 : i32
    %c0_i32_0 = arith.constant 0 : i32
    %c0_i32_1 = arith.constant 0 : i32
    return %c0_i32, %c0_i32_0 : i32, i32
  }
  func.func @transform_5(%arg0: i32) -> (i32, i32) {
    %c0_i32 = arith.constant 0 : i32
    %c0_i32_0 = arith.constant 0 : i32
    %c0_i32_1 = arith.constant 0 : i32
    return %c0_i32, %c0_i32_0 : i32, i32
  }
  func.func @transform_6(%arg0: i32) -> (i32, i32) {
    %c0_i32 = arith.constant 0 : i32
    %c0_i32_0 = arith.constant 0 : i32
    %c0_i32_1 = arith.constant 0 : i32
    return %c0_i32, %c0_i32_0 : i32, i32
  }
  func.func @transform_7(%arg0: i32) -> (i32, i32) {
    %c0_i32 = arith.constant 0 : i32
    %c0_i32_0 = arith.constant 0 : i32
    %c0_i32_1 = arith.constant 0 : i32
    return %c0_i32, %c0_i32_0 : i32, i32
  }
  func.func @transform_8(%arg0: i32) -> (i32, i32) {
    %c0_i32 = arith.constant 0 : i32
    %c0_i32_0 = arith.constant 0 : i32
    return %c0_i32, %arg0 : i32, i32
  }
  func.func @transform_9(%arg0: i32) -> (i32, i32) {
    %c0_i32 = arith.constant 0 : i32
    %c0_i32_0 = arith.constant 0 : i32
    return %c0_i32, %arg0 : i32, i32
  }
}

</mosaic_0001>

<llo_original>
// kernel: tpu_custom_call.1
$region0: #{tpu_custom_call.1}
  #allocation0 [shape = 'u32[]', space=smem, size = 0x4, offset = 0x4, fixed_abs, tag = 'smem constant byte address 0x4 - core index']
  #allocation1 [shape = 'u32[144,128]{1,0:T(1,128)}', space=vmem, size = 0x12000, scoped, tag = 'internal scratch']
  %s0 = inlined_call_operand.vmem [shape: f32[16,128], index: 0, kind: input, shape index: {}]
  %s1 = inlined_call_operand.vmem [shape: f32[8,128], index: 1, kind: input, shape index: {}]
  %s2 = inlined_call_operand.vmem [shape: f32[32,16], index: 2, kind: input, shape index: {}]
  %s3 = inlined_call_operand.vmem [shape: f32[32,1], index: 3, kind: input, shape index: {}]
  %s4 = inlined_call_operand.vmem [shape: f32[32,32], index: 4, kind: input, shape index: {}]
  %s5 = inlined_call_operand.vmem [shape: f32[32,1], index: 5, kind: input, shape index: {}]
  %s6 = inlined_call_operand.vmem [shape: f32[8,32], index: 6, kind: input, shape index: {}]
  %s7 = inlined_call_operand.vmem [shape: f32[8,1], index: 7, kind: input, shape index: {}]
  %s8 = inlined_call_operand.hbm [shape: s32[1,128], index: 8, kind: output, shape index: {0}]
  %s9 = inlined_call_operand.hbm [shape: f32[1,128], index: 9, kind: output, shape index: {1}]
  %10 = xla_tuple %s8, %s9
  %s11 = sld [smem:[#allocation0]]
  $region50: #{tpu_custom_call.1} parent=0
    _
  %s13 = ssub.s32 1, %s11
  %s14 = scalar_select 0, %s13, %s11
  $region1: #{tpu_custom_call.1} parent=0
    #allocation2 [shape = 'u8[512]{0}', space=vmem, size = 0x400, scoped, tag = 'output window, operand 0, single buffered']
    #allocation3 [shape = 's32[1]{0}', space=sflag, size = 0x4, scoped, tag = 'scoped memory for tpu_custom_call.1']
    #allocation4 [shape = 'u8[512]{0}', space=vmem, size = 0x400, scoped, tag = 'output window, operand 1, single buffered']
    #allocation5 [shape = 's32[1]{0}', space=sflag, size = 0x4, scoped, tag = 'scoped memory for tpu_custom_call.1']
    %15 = vsyncpa [#allocation3], 0
    %16 = vsyncpa [#allocation5], 0
    // Predicated region
    $region2: #{tpu_custom_call.1} parent=1 // pred_check
      _
    $region3: #{tpu_custom_call.1} parent=1 // pred_check_branch
      %18 = sbr.rel (0) target = $region5
    $region4: #{tpu_custom_call.1} parent=1 // pred_region
      _
    $region5: #{tpu_custom_call.1} parent=1 // pred_fallthru
      _
    // Predicated region
    $region6: #{tpu_custom_call.1} parent=1 // pred_check
      _
    $region7: #{tpu_custom_call.1} parent=1 // pred_check_branch
      %20 = sbr.rel (0) target = $region9
    $region8: #{tpu_custom_call.1} parent=1 // pred_region
      _
    $region9: #{tpu_custom_call.1} parent=1 // pred_fallthru
      _
    // Predicated region
    $region10: #{tpu_custom_call.1} parent=1 // pred_check
      _
    $region11: #{tpu_custom_call.1} parent=1 // pred_check_branch
      %22 = sbr.rel (0) target = $region13
    $region12: #{tpu_custom_call.1} parent=1 // pred_region
      _
    $region13: #{tpu_custom_call.1} parent=1 // pred_fallthru
      _
    // Predicated region
    $region14: #{tpu_custom_call.1} parent=1 // pred_check
      _
    $region15: #{tpu_custom_call.1} parent=1 // pred_check_branch
      %24 = sbr.rel (0) target = $region17
    $region16: #{tpu_custom_call.1} parent=1 // pred_region
      _
    $region17: #{tpu_custom_call.1} parent=1 // pred_fallthru
      _
    // Predicated region
    $region18: #{tpu_custom_call.1} parent=1 // pred_check
      _
    $region19: #{tpu_custom_call.1} parent=1 // pred_check_branch
      %26 = sbr.rel (0) target = $region21
    $region20: #{tpu_custom_call.1} parent=1 // pred_region
      _
    $region21: #{tpu_custom_call.1} parent=1 // pred_fallthru
      _
    // Predicated region
    $region22: #{tpu_custom_call.1} parent=1 // pred_check
      _
    $region23: #{tpu_custom_call.1} parent=1 // pred_check_branch
      %28 = sbr.rel (0) target = $region25
    $region24: #{tpu_custom_call.1} parent=1 // pred_region
      _
    $region25: #{tpu_custom_call.1} parent=1 // pred_fallthru
      _
    // Predicated region
    $region26: #{tpu_custom_call.1} parent=1 // pred_check
      _
    $region27: #{tpu_custom_call.1} parent=1 // pred_check_branch
      %30 = sbr.rel (0) target = $region29
    $region28: #{tpu_custom_call.1} parent=1 // pred_region
      _
    $region29: #{tpu_custom_call.1} parent=1 // pred_fallthru
      _
    // Predicated region
    $region30: #{tpu_custom_call.1} parent=1 // pred_check
      _
    $region31: #{tpu_custom_call.1} parent=1 // pred_check_branch
      %32 = sbr.rel (0) target = $region33
    $region32: #{tpu_custom_call.1} parent=1 // pred_region
      _
    $region33: #{tpu_custom_call.1} parent=1 // pred_fallthru
      _
    %v33 = vld [vmem:[%s0] sm:$0xff]
    %v34 = vld [vmem:[%s0 + $0x8] sm:$0xff]
    %v35 = vld [vmem:[%s2] sm:$0xff]
    %v36 = vld [vmem:[%s2 + $0x8] sm:$0xff]
    %v37 = vld [vmem:[%s2 + $0x10] sm:$0xff]
    %v38 = vld [vmem:[%s2 + $0x18] sm:$0xff]
    %v39 = vld [vmem:[%s3] sm:$0xff]
    %v40 = vld [vmem:[%s3 + $0x8] sm:$0xff]
    %v41 = vld [vmem:[%s3 + $0x10] sm:$0xff]
    %v42 = vld [vmem:[%s3 + $0x18] sm:$0xff]
    %44 = vset.pattern.permute.xlu0 0
    %45 = vperm.xlu0 %44, %v39
    %v46 = vpop.permute.xlu0 %45
    %49 = vset.pattern.permute.xlu0 0
    %50 = vperm.xlu0 %49, %v40
    %v51 = vpop.permute.xlu0 %50
    %54 = vset.pattern.permute.xlu0 0
    %55 = vperm.xlu0 %54, %v41
    %v56 = vpop.permute.xlu0 %55
    %59 = vset.pattern.permute.xlu0 0
    %60 = vperm.xlu0 %59, %v42
    %v61 = vpop.permute.xlu0 %60
    %vm63 = vcmask 130048
    %v65 = vsel %vm63, %v35, 0
    %v68 = vsel %vm63, %v36, 0
    %v71 = vsel %vm63, %v37, 0
    %v74 = vsel %vm63, %v38, 0
    %76 = vmatprep.subr.mxu0 0.0
    %77 = vmatpush1.msra.mxu0 %v33
    %78 = vmatprep.subr.mxu0 0.0
    %79 = vmatpush1.msra.mxu0 %v34
    %80 = vmatprep.subr.mxu0 0.0
    %81 = vmatpush1.msra.mxu0 0.0
    %82 = vmatprep.subr.mxu0 0.0
    %83 = vmatpush1.msra.mxu0 0.0
    %84 = vmatprep.subr.mxu0 0.0
    %85 = vmatpush1.msra.mxu0 0.0
    %86 = vmatprep.subr.mxu0 0.0
    %87 = vmatpush1.msra.mxu0 0.0
    %88 = vmatprep.subr.mxu0 0.0
    %89 = vmatpush1.msra.mxu0 0.0
    %90 = vmatprep.subr.mxu0 0.0
    %91 = vmatpush1.msra.mxu0 0.0
    %92 = vmatprep.subr.mxu0 0.0
    %93 = vmatpush1.msra.mxu0 0.0
    %94 = vmatprep.subr.mxu0 0.0
    %95 = vmatpush1.msra.mxu0 0.0
    %96 = vmatprep.subr.mxu0 0.0
    %97 = vmatpush1.msra.mxu0 0.0
    %98 = vmatprep.subr.mxu0 0.0
    %99 = vmatpush1.msra.mxu0 0.0
    %100 = vmatprep.subr.mxu0 0.0
    %101 = vmatpush1.msra.mxu0 0.0
    %102 = vmatprep.subr.mxu0 0.0
    %103 = vmatpush1.msra.mxu0 0.0
    %104 = vmatprep.subr.mxu0 0.0
    %105 = vmatpush1.msra.mxu0 0.0
    %106 = vmatprep.subr.mxu0 0.0
    %107 = vmatpush1.msra.mxu0 0.0
    %108 = vmatprep.subr.mxu0 0.0
    %109 = vmatpush1.msra.mxu0 0.0
    %110 = vmatprep.subr.mxu0 0.0
    %111 = vmatpush1.msra.mxu0 0.0
    %112 = vmatprep.subr.mxu0 0.0
    %113 = vmatpush1.msra.mxu0 0.0
    %114 = vmatprep.subr.mxu0 0.0
    %115 = vmatpush1.msra.mxu0 0.0
    %116 = vmatprep.subr.mxu0 0.0
    %117 = vmatpush1.msra.mxu0 0.0
    %118 = vmatprep.subr.mxu0 0.0
    %119 = vmatpush1.msra.mxu0 0.0
    %120 = vmatprep.subr.mxu0 0.0
    %121 = vmatpush1.msra.mxu0 0.0
    %122 = vmatprep.subr.mxu0 0.0
    %123 = vmatpush1.msra.mxu0 0.0
    %124 = vmatprep.subr.mxu0 0.0
    %125 = vmatpush1.msra.mxu0 0.0
    %126 = vmatprep.subr.mxu0 0.0
    %127 = vmatpush1.msra.mxu0 0.0
    %128 = vmatprep.subr.mxu0 0.0
    %129 = vmatpush1.msra.mxu0 0.0
    %130 = vmatprep.subr.mxu0 0.0
    %131 = vmatpush1.msra.mxu0 0.0
    %132 = vmatprep.subr.mxu0 0.0
    %133 = vmatpush1.msra.mxu0 0.0
    %134 = vmatprep.subr.mxu0 0.0
    %135 = vmatpush1.msra.mxu0 0.0
    %136 = vmatprep.subr.mxu0 0.0
    %137 = vmatpush1.msra.mxu0 0.0
    %138 = vmatprep.subr.mxu0 0.0
    %139 = vmatpush1.msra.mxu0 0.0
    %140 = vmatprep.mubr.f32.mxu0 0.0
    %141 = vmatmul.mubr.f32.gmra.mrb[0].mxu0 %v65
    %v142 = vpop.f32.mrb[0].mxu0
    %v143 = vadd.f32 %v46, %v142
    %v144 = vpop.f32.mrb[0].mxu0
    %145 = vmatprep.mubr.f32.mxu0 0.0
    %146 = vmatmul.mubr.f32.gmra.mrb[0].mxu0 %v68
    %v147 = vpop.f32.mrb[0].mxu0
    %v148 = vadd.f32 %v51, %v147
    %v149 = vpop.f32.mrb[0].mxu0
    %150 = vmatprep.mubr.f32.mxu0 0.0
    %151 = vmatmul.mubr.f32.gmra.mrb[0].mxu0 %v71
    %v152 = vpop.f32.mrb[0].mxu0
    %v153 = vadd.f32 %v56, %v152
    %v154 = vpop.f32.mrb[0].mxu0
    %155 = vmatprep.mubr.f32.mxu0 0.0
    %156 = vmatmul.mubr.f32.gmra.mrb[0].mxu0 %v74
    %v157 = vpop.f32.mrb[0].mxu0
    %v158 = vadd.f32 %v61, %v157
    %v159 = vpop.f32.mrb[0].mxu0
    %160 = vdwg.mxu0
    %v161 = vmax.f32 %v143, 0.0
    %v162 = vmax.f32 %v148, 0.0
    %v163 = vmax.f32 %v153, 0.0
    %v164 = vmax.f32 %v158, 0.0
    %v165 = vld [vmem:[%s4] sm:$0xff]
    %v166 = vld [vmem:[%s4 + $0x8] sm:$0xff]
    %v167 = vld [vmem:[%s4 + $0x10] sm:$0xff]
    %v168 = vld [vmem:[%s4 + $0x18] sm:$0xff]
    %v169 = vld [vmem:[%s5] sm:$0xff]
    %v170 = vld [vmem:[%s5 + $0x8] sm:$0xff]
    %v171 = vld [vmem:[%s5 + $0x10] sm:$0xff]
    %v172 = vld [vmem:[%s5 + $0x18] sm:$0xff]
    %174 = vset.pattern.permute.xlu0 0
    %175 = vperm.xlu0 %174, %v169
    %v176 = vpop.permute.xlu0 %175
    %179 = vset.pattern.permute.xlu0 0
    %180 = vperm.xlu0 %179, %v170
    %v181 = vpop.permute.xlu0 %180
    %184 = vset.pattern.permute.xlu0 0
    %185 = vperm.xlu0 %184, %v171
    %v186 = vpop.permute.xlu0 %185
    %189 = vset.pattern.permute.xlu0 0
    %190 = vperm.xlu0 %189, %v172
    %v191 = vpop.permute.xlu0 %190
    %vm193 = vcmask 261120
    %v195 = vsel %vm193, %v165, 0
    %v198 = vsel %vm193, %v166, 0
    %v201 = vsel %vm193, %v167, 0
    %v204 = vsel %vm193, %v168, 0
    %206 = vmatprep.subr.mxu0 0.0
    %207 = vmatpush1.msra.mxu0 %v161
    %208 = vmatprep.subr.mxu0 0.0
    %209 = vmatpush1.msra.mxu0 %v162
    %210 = vmatprep.subr.mxu0 0.0
    %211 = vmatpush1.msra.mxu0 %v163
    %212 = vmatprep.subr.mxu0 0.0
    %213 = vmatpush1.msra.mxu0 %v164
    %214 = vmatprep.subr.mxu0 0.0
    %215 = vmatpush1.msra.mxu0 0.0
    %216 = vmatprep.subr.mxu0 0.0
    %217 = vmatpush1.msra.mxu0 0.0
    %218 = vmatprep.subr.mxu0 0.0
    %219 = vmatpush1.msra.mxu0 0.0
    %220 = vmatprep.subr.mxu0 0.0
    %221 = vmatpush1.msra.mxu0 0.0
    %222 = vmatprep.subr.mxu0 0.0
    %223 = vmatpush1.msra.mxu0 0.0
    %224 = vmatprep.subr.mxu0 0.0
    %225 = vmatpush1.msra.mxu0 0.0
    %226 = vmatprep.subr.mxu0 0.0
    %227 = vmatpush1.msra.mxu0 0.0
    %228 = vmatprep.subr.mxu0 0.0
    %229 = vmatpush1.msra.mxu0 0.0
    %230 = vmatprep.subr.mxu0 0.0
    %231 = vmatpush1.msra.mxu0 0.0
    %232 = vmatprep.subr.mxu0 0.0
    %233 = vmatpush1.msra.mxu0 0.0
    %234 = vmatprep.subr.mxu0 0.0
    %235 = vmatpush1.msra.mxu0 0.0
    %236 = vmatprep.subr.mxu0 0.0
    %237 = vmatpush1.msra.mxu0 0.0
    %238 = vmatprep.subr.mxu0 0.0
    %239 = vmatpush1.msra.mxu0 0.0
    %240 = vmatprep.subr.mxu0 0.0
    %241 = vmatpush1.msra.mxu0 0.0
    %242 = vmatprep.subr.mxu0 0.0
    %243 = vmatpush1.msra.mxu0 0.0
    %244 = vmatprep.subr.mxu0 0.0
    %245 = vmatpush1.msra.mxu0 0.0
    %246 = vmatprep.subr.mxu0 0.0
    %247 = vmatpush1.msra.mxu0 0.0
    %248 = vmatprep.subr.mxu0 0.0
    %249 = vmatpush1.msra.mxu0 0.0
    %250 = vmatprep.subr.mxu0 0.0
    %251 = vmatpush1.msra.mxu0 0.0
    %252 = vmatprep.subr.mxu0 0.0
    %253 = vmatpush1.msra.mxu0 0.0
    %254 = vmatprep.subr.mxu0 0.0
    %255 = vmatpush1.msra.mxu0 0.0
    %256 = vmatprep.subr.mxu0 0.0
    %257 = vmatpush1.msra.mxu0 0.0
    %258 = vmatprep.subr.mxu0 0.0
    %259 = vmatpush1.msra.mxu0 0.0
    %260 = vmatprep.subr.mxu0 0.0
    %261 = vmatpush1.msra.mxu0 0.0
    %262 = vmatprep.subr.mxu0 0.0
    %263 = vmatpush1.msra.mxu0 0.0
    %264 = vmatprep.subr.mxu0 0.0
    %265 = vmatpush1.msra.mxu0 0.0
    %266 = vmatprep.subr.mxu0 0.0
    %267 = vmatpush1.msra.mxu0 0.0
    %268 = vmatprep.subr.mxu0 0.0
    %269 = vmatpush1.msra.mxu0 0.0
    %270 = vmatprep.mubr.f32.mxu0 0.0
    %271 = vmatmul.mubr.f32.gmra.mrb[0].mxu0 %v195
    %v272 = vpop.f32.mrb[0].mxu0
    %v273 = vadd.f32 %v176, %v272
    %v274 = vpop.f32.mrb[0].mxu0
    %275 = vmatprep.mubr.f32.mxu0 0.0
    %276 = vmatmul.mubr.f32.gmra.mrb[0].mxu0 %v198
    %v277 = vpop.f32.mrb[0].mxu0
    %v278 = vadd.f32 %v181, %v277
    %v279 = vpop.f32.mrb[0].mxu0
    %280 = vmatprep.mubr.f32.mxu0 0.0
    %281 = vmatmul.mubr.f32.gmra.mrb[0].mxu0 %v201
    %v282 = vpop.f32.mrb[0].mxu0
    %v283 = vadd.f32 %v186, %v282
    %v284 = vpop.f32.mrb[0].mxu0
    %285 = vmatprep.mubr.f32.mxu0 0.0
    %286 = vmatmul.mubr.f32.gmra.mrb[0].mxu0 %v204
    %v287 = vpop.f32.mrb[0].mxu0
    %v288 = vadd.f32 %v191, %v287
    %v289 = vpop.f32.mrb[0].mxu0
    %290 = vdwg.mxu0
    %v291 = vmax.f32 %v273, 0.0
    %v292 = vmax.f32 %v278, 0.0
    %v293 = vmax.f32 %v283, 0.0
    %v294 = vmax.f32 %v288, 0.0
    %v295 = vld [vmem:[%s6] sm:$0xff]
    %v296 = vld [vmem:[%s7] sm:$0xff]
    %298 = vset.pattern.permute.xlu0 0
    %299 = vperm.xlu0 %298, %v296
    %v300 = vpop.permute.xlu0 %299
    %v303 = vsel %vm193, %v295, 0
    %305 = vmatprep.subr.mxu0 0.0
    %306 = vmatpush1.msra.mxu0 %v291
    %307 = vmatprep.subr.mxu0 0.0
    %308 = vmatpush1.msra.mxu0 %v292
    %309 = vmatprep.subr.mxu0 0.0
    %310 = vmatpush1.msra.mxu0 %v293
    %311 = vmatprep.subr.mxu0 0.0
    %312 = vmatpush1.msra.mxu0 %v294
    %313 = vmatprep.subr.mxu0 0.0
    %314 = vmatpush1.msra.mxu0 0.0
    %315 = vmatprep.subr.mxu0 0.0
    %316 = vmatpush1.msra.mxu0 0.0
    %317 = vmatprep.subr.mxu0 0.0
    %318 = vmatpush1.msra.mxu0 0.0
    %319 = vmatprep.subr.mxu0 0.0
    %320 = vmatpush1.msra.mxu0 0.0
    %321 = vmatprep.subr.mxu0 0.0
    %322 = vmatpush1.msra.mxu0 0.0
    %323 = vmatprep.subr.mxu0 0.0
    %324 = vmatpush1.msra.mxu0 0.0
    %325 = vmatprep.subr.mxu0 0.0
    %326 = vmatpush1.msra.mxu0 0.0
    %327 = vmatprep.subr.mxu0 0.0
    %328 = vmatpush1.msra.mxu0 0.0
    %329 = vmatprep.subr.mxu0 0.0
    %330 = vmatpush1.msra.mxu0 0.0
    %331 = vmatprep.subr.mxu0 0.0
    %332 = vmatpush1.msra.mxu0 0.0
    %333 = vmatprep.subr.mxu0 0.0
    %334 = vmatpush1.msra.mxu0 0.0
    %335 = vmatprep.subr.mxu0 0.0
    %336 = vmatpush1.msra.mxu0 0.0
    %337 = vmatprep.subr.mxu0 0.0
    %338 = vmatpush1.msra.mxu0 0.0
    %339 = vmatprep.subr.mxu0 0.0
    %340 = vmatpush1.msra.mxu0 0.0
    %341 = vmatprep.subr.mxu0 0.0
    %342 = vmatpush1.msra.mxu0 0.0
    %343 = vmatprep.subr.mxu0 0.0
    %344 = vmatpush1.msra.mxu0 0.0
    %345 = vmatprep.subr.mxu0 0.0
    %346 = vmatpush1.msra.mxu0 0.0
    %347 = vmatprep.subr.mxu0 0.0
    %348 = vmatpush1.msra.mxu0 0.0
    %349 = vmatprep.subr.mxu0 0.0
    %350 = vmatpush1.msra.mxu0 0.0
    %351 = vmatprep.subr.mxu0 0.0
    %352 = vmatpush1.msra.mxu0 0.0
    %353 = vmatprep.subr.mxu0 0.0
    %354 = vmatpush1.msra.mxu0 0.0
    %355 = vmatprep.subr.mxu0 0.0
    %356 = vmatpush1.msra.mxu0 0.0
    %357 = vmatprep.subr.mxu0 0.0
    %358 = vmatpush1.msra.mxu0 0.0
    %359 = vmatprep.subr.mxu0 0.0
    %360 = vmatpush1.msra.mxu0 0.0
    %361 = vmatprep.subr.mxu0 0.0
    %362 = vmatpush1.msra.mxu0 0.0
    %363 = vmatprep.subr.mxu0 0.0
    %364 = vmatpush1.msra.mxu0 0.0
    %365 = vmatprep.subr.mxu0 0.0
    %366 = vmatpush1.msra.mxu0 0.0
    %367 = vmatprep.subr.mxu0 0.0
    %368 = vmatpush1.msra.mxu0 0.0
    %369 = vmatprep.mubr.f32.mxu0 0.0
    %370 = vmatmul.mubr.f32.gmra.mrb[0].mxu0 %v303
    %v371 = vpop.f32.mrb[0].mxu0
    %v372 = vadd.f32 %v300, %v371
    %v373 = vpop.f32.mrb[0].mxu0
    %374 = vdwg.mxu0
    %v375 = vrot.slane %v372, 4
    %v376 = vmax.f32 %v372, %v375
    %v377 = vrot.slane %v376, 2
    %v378 = vmax.f32 %v376, %v377
    %v379 = vrot.slane %v378, 1
    %v380 = vmax.f32 %v378, %v379
    %v381 = vsub.f32 %v372, %v380
    %v382 = vmul.f32 %v381, 1.442695
    %v383 = vpow.pop %v382
    %v384 = vrot.slane %v383, 4
    %v385 = vadd.f32 %v383, %v384
    %v386 = vrot.slane %v385, 2
    %v387 = vadd.f32 %v385, %v386
    %v388 = vrot.slane %v387, 1
    %v389 = vadd.f32 %v387, %v388
    %v390 = vlog2.pop %v389
    %v391 = vmul.f32 %v390, 0.6931472
    %v392 = vsub.f32 %v381, %v391
    %v393 = vld [vmem:[%s1] sm:$0xff]
    %v394 = vadd.f32 %v392, %v393
    %v395 = vrot.slane %v394, 4
    %v396 = vmax.f32 %v394, %v395
    %v397 = vrot.slane %v396, 2
    %v398 = vmax.f32 %v396, %v397
    %v399 = vrot.slane %v398, 1
    %v400 = vmax.f32 %v398, %v399
    %v401 = vlaneseq
    %v402 = vshrl.u32 %v401, 7
    %vm403 = vcmp.eq.f32.partialorder %v394, %v400
    %v404 = vsel %vm403, %v402, 8
    %v405 = vrot.slane %v404, 4
    %vm406 = vcmp.lt.s32.totalorder %v404, %v405
    %v407 = vsel %vm406, %v404, %v405
    %v408 = vrot.slane %v407, 2
    %vm409 = vcmp.lt.s32.totalorder %v407, %v408
    %v410 = vsel %vm409, %v407, %v408
    %v411 = vrot.slane %v410, 1
    %vm412 = vcmp.lt.s32.totalorder %v410, %v411
    %v413 = vsel %vm412, %v410, %v411
    %vm414 = vcmp.eq.s32.totalorder %v402, %v413
    %v415 = vsel %vm414, %v392, 0.0
    %v416 = vrot.slane %v415, 4
    %v417 = vadd.f32 %v415, %v416
    %v418 = vrot.slane %v417, 2
    %v419 = vadd.f32 %v417, %v418
    %v420 = vrot.slane %v419, 1
    %v421 = vadd.f32 %v419, %v420
    %422 = vst [vmem:[#allocation2] sm:$0x1] %v413
    %423 = vst [vmem:[#allocation4] sm:$0x1] %v421
    // Predicated region
    $region34: #{tpu_custom_call.1} parent=1 // pred_check
      _
    $region35: #{tpu_custom_call.1} parent=1 // pred_check_branch
      %425 = sbr.rel (0) target = $region37
    $region36: #{tpu_custom_call.1} parent=1 // pred_region
      %s427 = ssub.s32 16, 16
      %428 = vsyncadd [#allocation3], %s427
      %s430 = sshll.u32 [#allocation2], 4
      %s431 = int_to_ptr.vmem [resolvable:$true] %s430
      %433 = dma.vmem_to_hbm [thread:$0]  %s431, 16, %s8, [#allocation3]
    $region37: #{tpu_custom_call.1} parent=1 // pred_fallthru
      _
    // Predicated region
    $region38: #{tpu_custom_call.1} parent=1 // pred_check
      _
    $region39: #{tpu_custom_call.1} parent=1 // pred_check_branch
      %435 = sbr.rel (0) target = $region41
    $region40: #{tpu_custom_call.1} parent=1 // pred_region
      %s437 = ssub.s32 16, 16
      %438 = vsyncadd [#allocation5], %s437
      %s440 = sshll.u32 [#allocation4], 4
      %s441 = int_to_ptr.vmem [resolvable:$true] %s440
      %443 = dma.vmem_to_hbm [thread:$0]  %s441, 16, %s9, [#allocation5]
    $region41: #{tpu_custom_call.1} parent=1 // pred_fallthru
      _
    // Predicated region
    $region42: #{tpu_custom_call.1} parent=1 // pred_check
      _
    $region43: #{tpu_custom_call.1} parent=1 // pred_check_branch
      %445 = sbr.rel (0) target = $region45
    $region44: #{tpu_custom_call.1} parent=1 // pred_region
      %446 = dma.done [#allocation3], 16
    $region45: #{tpu_custom_call.1} parent=1 // pred_fallthru
      _
    // Predicated region
    $region46: #{tpu_custom_call.1} parent=1 // pred_check
      _
    $region47: #{tpu_custom_call.1} parent=1 // pred_check_branch
      %448 = sbr.rel (0) target = $region49
    $region48: #{tpu_custom_call.1} parent=1 // pred_region
      %449 = dma.done [#allocation5], 16
    $region49: #{tpu_custom_call.1} parent=1 // pred_fallthru
      _
    %450 = vsyncpa [#allocation3], 1
    %451 = vsyncpa [#allocation5], 1

</llo_original>
